<compile_context>
chip_gen: v6e
topology: v6e:2x2x1
jax: 0.10.0
libtpu: 0.0.40
codegen_flags: <defaults>
</compile_context>

<pallas_src>
import jax
import jax.numpy as jnp
from jax.experimental import pallas as pl
from jax.experimental.pallas import tpu as pltpu

_EPS = 1e-12  # matches torch.nn.functional.normalize default eps


def transe_kernel(s_ref, r_ref, o_ref, out_ref):
    s = s_ref[...].astype(jnp.float32)
    r = r_ref[...].astype(jnp.float32)
    o = o_ref[...].astype(jnp.float32)

    def l2_normalize(x):
        sumsq = jnp.sum(x * x, axis=-1, keepdims=True)
        # x / max(||x||, eps) == x * rsqrt(max(||x||^2, eps^2)); rsqrt runs on
        # the EUP slot and replaces a vector divide with a multiply.
        return x * jax.lax.rsqrt(jnp.maximum(sumsq, _EPS * _EPS))

    dist = jnp.sum(
        jnp.abs(l2_normalize(s) + l2_normalize(r) - l2_normalize(o)), axis=-1
    )
    # Lane-dense store: the bm per-row distances go out along the lane axis.
    out_ref[...] = dist.reshape(out_ref.shape).astype(out_ref.dtype)


def _round_up(x, m):
    return (x + m - 1) // m * m


def transe_distance(s_emb, r_emb, o_emb, *, bm=1024):
    """s_emb, r_emb, o_emb: [B, D]. Returns [B] float32 TransE L1 distances."""
    B, D = s_emb.shape
    itemsize = jnp.dtype(s_emb.dtype).itemsize

    # VMEM budget: 3 inputs x 2 pipeline buffers x bm x D x itemsize.  Keep
    # the double-buffered inputs under ~24 MiB so the kernel fits the default
    # scoped VMEM on every generation, including v7x (64 MiB physical).
    vmem_input_budget = 24 * 1024 * 1024
    bm_cap = max(8, (vmem_input_budget // (3 * 2 * D * itemsize)) // 8 * 8)
    bm = int(min(bm, bm_cap, _round_up(B, 8)))  # don't over-pad tiny batches
    bm = max(bm, 8)

    B_pad = _round_up(B, bm)
    if B_pad != B:
        # Zero rows are safe: rsqrt(max(0, eps^2)) * 0 == 0 -> distance 0.
        pad = ((0, B_pad - B), (0, 0))
        s_emb = jnp.pad(s_emb, pad)
        r_emb = jnp.pad(r_emb, pad)
        o_emb = jnp.pad(o_emb, pad)

    num_tiles = B_pad // bm

    out = pl.pallas_call(
        transe_kernel,
        out_shape=jax.ShapeDtypeStruct((num_tiles, bm), jnp.float32),
        grid_spec=pltpu.PrefetchScalarGridSpec(
            num_scalar_prefetch=0,
            grid=(num_tiles,),
            in_specs=[
                pl.BlockSpec((bm, D), lambda i: (i, 0)),
                pl.BlockSpec((bm, D), lambda i: (i, 0)),
                pl.BlockSpec((bm, D), lambda i: (i, 0)),
            ],
            out_specs=pl.BlockSpec((1, bm), lambda i: (i, 0)),
        ),
        compiler_params=pltpu.CompilerParams(
            dimension_semantics=("parallel",),
            vmem_limit_bytes=32 * 1024 * 1024,
        ),
    )(s_emb, r_emb, o_emb)
    return out.reshape(B_pad)[:B]


def xavier_uniform(key, shape):
    # nn.init.xavier_uniform_ on a 2-D weight: bound = sqrt(6/(fan_in+fan_out))
    fan_out, fan_in = shape
    a = (6.0 / (fan_in + fan_out)) ** 0.5
    return jax.random.uniform(key, shape, jnp.float32, minval=-a, maxval=a)


class TransEModelPallas:
    def __init__(self, num_entities, num_relations, embed_dim, key):
        ke, kr = jax.random.split(key)
        self.num_entities = num_entities
        self.num_relations = num_relations
        self.embed_dim = embed_dim
        self.e_embeddings = xavier_uniform(ke, (num_entities, embed_dim))
        self.r_embeddings = xavier_uniform(kr, (num_relations, embed_dim))

    def __call__(self, batch, *, bm=1024):
        # Embedding lookups (plain-JAX glue), then the Pallas kernel for the
        # normalize + L1-distance math.
        s = jnp.take(self.e_embeddings, batch["s"], axis=0)
        o = jnp.take(self.e_embeddings, batch["o"], axis=0)
        r = jnp.take(self.r_embeddings, batch["r"], axis=0)
        return transe_distance(s, r, o, bm=bm)


def _reference(model, batch):
    # pure-JAX reference matching torch.nn.functional.normalize semantics
    s = jnp.take(model.e_embeddings, batch["s"], axis=0)
    o = jnp.take(model.e_embeddings, batch["o"], axis=0)
    r = jnp.take(model.r_embeddings, batch["r"], axis=0)

    def norm(x):
        n = jnp.sqrt(jnp.sum(x * x, axis=-1, keepdims=True))
        return x / jnp.maximum(n, _EPS)

    s, r, o = norm(s), norm(r), norm(o)
    return jnp.sum(jnp.abs(s + r - o), axis=-1)


if __name__ == "__main__":
    key = jax.random.PRNGKey(0)

    # --- test 1: tiny shapes (original configuration) ----------------------
    num_entities, num_relations, embed_dim = 64, 16, 32
    batch_size = 8
    k_model, ks, kr, ko, key = jax.random.split(key, 5)
    model = TransEModelPallas(num_entities, num_relations, embed_dim, k_model)
    batch = {
        "s": jax.random.randint(ks, (batch_size,), 0, num_entities, jnp.int32),
        "r": jax.random.randint(kr, (batch_size,), 0, num_relations, jnp.int32),
        "o": jax.random.randint(ko, (batch_size,), 0, num_entities, jnp.int32),
    }
    out = jax.block_until_ready(model(batch))
    ref = _reference(model, batch)
    assert out.shape == (batch_size,)
    assert jnp.allclose(out, ref, atol=1e-5, rtol=1e-5)

    # --- test 2: exercises batch padding, multi-step grid, lane-dense out --
    num_entities2, num_relations2, embed_dim2 = 64, 16, 128
    batch_size2 = 300  # not a multiple of the tile -> exercises zero padding
    k_model2, ks2, kr2, ko2, key = jax.random.split(key, 5)
    model2 = TransEModelPallas(num_entities2, num_relations2, embed_dim2, k_model2)
    batch2 = {
        "s": jax.random.randint(ks2, (batch_size2,), 0, num_entities2, jnp.int32),
        "r": jax.random.randint(kr2, (batch_size2,), 0, num_relations2, jnp.int32),
        "o": jax.random.randint(ko2, (batch_size2,), 0, num_entities2, jnp.int32),
    }
    out2 = jax.block_until_ready(model2(batch2, bm=128))  # 3-step grid
    ref2 = _reference(model2, batch2)
    assert out2.shape == (batch_size2,)
    assert jnp.allclose(out2, ref2, atol=1e-5, rtol=1e-5)

    print("KERNEL_OK")
</pallas_src>

<mosaic_0001>
module attributes {stable_mosaic.version = 11 : i64} {
  func.func @transe_kernel(%arg0: i32, %arg1: memref<8x32xf32, #tpu.memory_space<vmem>>, %arg2: memref<8x32xf32, #tpu.memory_space<vmem>>, %arg3: memref<8x32xf32, #tpu.memory_space<vmem>>, %arg4: memref<1x8xf32, #tpu.memory_space<vmem>>) attributes {dimension_semantics = [#tpu.dimension_semantics<parallel>], iteration_bounds = array<i64: 1>, scalar_prefetch = 0 : i64, scratch_operands = 0 : i64, tpu.core_type = #tpu.core_type<tc>, window_params = [{transform_indices = @transform_0, window_bounds = array<i64: 8, 32>}, {transform_indices = @transform_1, window_bounds = array<i64: 8, 32>}, {transform_indices = @transform_2, window_bounds = array<i64: 8, 32>}, {transform_indices = @transform_3, window_bounds = array<i64: 1, 8>}]} {
    %c0 = arith.constant 0 : index
    %c0_0 = arith.constant 0 : index
    %0 = vector.load %arg1[%c0, %c0_0] : memref<8x32xf32, #tpu.memory_space<vmem>>, vector<8x32xf32>
    %c0_1 = arith.constant 0 : index
    %c0_2 = arith.constant 0 : index
    %1 = vector.load %arg2[%c0_1, %c0_2] : memref<8x32xf32, #tpu.memory_space<vmem>>, vector<8x32xf32>
    %c0_3 = arith.constant 0 : index
    %c0_4 = arith.constant 0 : index
    %2 = vector.load %arg3[%c0_3, %c0_4] : memref<8x32xf32, #tpu.memory_space<vmem>>, vector<8x32xf32>
    %3 = arith.mulf %0, %0 : vector<8x32xf32>
    %cst = arith.constant dense<0.000000e+00> : vector<8xf32>
    %4 = vector.multi_reduction <add>, %3, %cst [1] : vector<8x32xf32> to vector<8xf32>
    %5 = vector.shape_cast %4 : vector<8xf32> to vector<8x1xf32>
    %cst_5 = arith.constant 1.000000e-24 : f32
    %6 = vector.broadcast %cst_5 : f32 to vector<8x1xf32>
    %7 = arith.maximumf %5, %6 : vector<8x1xf32>
    %8 = math.rsqrt %7 : vector<8x1xf32>
    %9 = vector.broadcast %8 : vector<8x1xf32> to vector<8x32xf32>
    %10 = arith.mulf %0, %9 : vector<8x32xf32>
    %11 = arith.mulf %1, %1 : vector<8x32xf32>
    %cst_6 = arith.constant dense<0.000000e+00> : vector<8xf32>
    %12 = vector.multi_reduction <add>, %11, %cst_6 [1] : vector<8x32xf32> to vector<8xf32>
    %13 = vector.shape_cast %12 : vector<8xf32> to vector<8x1xf32>
    %cst_7 = arith.constant 1.000000e-24 : f32
    %14 = vector.broadcast %cst_7 : f32 to vector<8x1xf32>
    %15 = arith.maximumf %13, %14 : vector<8x1xf32>
    %16 = math.rsqrt %15 : vector<8x1xf32>
    %17 = vector.broadcast %16 : vector<8x1xf32> to vector<8x32xf32>
    %18 = arith.mulf %1, %17 : vector<8x32xf32>
    %19 = arith.addf %10, %18 : vector<8x32xf32>
    %20 = arith.mulf %2, %2 : vector<8x32xf32>
    %cst_8 = arith.constant dense<0.000000e+00> : vector<8xf32>
    %21 = vector.multi_reduction <add>, %20, %cst_8 [1] : vector<8x32xf32> to vector<8xf32>
    %22 = vector.shape_cast %21 : vector<8xf32> to vector<8x1xf32>
    %cst_9 = arith.constant 1.000000e-24 : f32
    %23 = vector.broadcast %cst_9 : f32 to vector<8x1xf32>
    %24 = arith.maximumf %22, %23 : vector<8x1xf32>
    %25 = math.rsqrt %24 : vector<8x1xf32>
    %26 = vector.broadcast %25 : vector<8x1xf32> to vector<8x32xf32>
    %27 = arith.mulf %2, %26 : vector<8x32xf32>
    %28 = arith.subf %19, %27 : vector<8x32xf32>
    %29 = math.absf %28 : vector<8x32xf32>
    %cst_10 = arith.constant dense<0.000000e+00> : vector<8xf32>
    %30 = vector.multi_reduction <add>, %29, %cst_10 [1] : vector<8x32xf32> to vector<8xf32>
    %31 = vector.shape_cast %30 : vector<8xf32> to vector<1x8xf32>
    %c0_11 = arith.constant 0 : index
    %c0_12 = arith.constant 0 : index
    %32 = vector.load %arg4[%c0_11, %c0_12] : memref<1x8xf32, #tpu.memory_space<vmem>>, vector<1x8xf32>
    tpu.vector_store %arg4[%c0_11, %c0_12], %31 {strides = array<i32>} : memref<1x8xf32, #tpu.memory_space<vmem>>, vector<1x8xf32>,
    return
  }
  func.func @transform_0(%arg0: i32) -> (i32, i32) {
    %c0_i32 = arith.constant 0 : i32
    %c0_i32_0 = arith.constant 0 : i32
    return %arg0, %c0_i32 : i32, i32
  }
  func.func @transform_1(%arg0: i32) -> (i32, i32) {
    %c0_i32 = arith.constant 0 : i32
    %c0_i32_0 = arith.constant 0 : i32
    return %arg0, %c0_i32 : i32, i32
  }
  func.func @transform_2(%arg0: i32) -> (i32, i32) {
    %c0_i32 = arith.constant 0 : i32
    %c0_i32_0 = arith.constant 0 : i32
    return %arg0, %c0_i32 : i32, i32
  }
  func.func @transform_3(%arg0: i32) -> (i32, i32) {
    %c0_i32 = arith.constant 0 : i32
    %c0_i32_0 = arith.constant 0 : i32
    return %arg0, %c0_i32 : i32, i32
  }
}

</mosaic_0001>

<llo_original>
// kernel: tpu_custom_call.1
$region0: #{tpu_custom_call.1}
  #allocation0 [shape = 'u32[]', space=smem, size = 0x4, offset = 0x4, fixed_abs, tag = 'smem constant byte address 0x4 - core index']
  #allocation1 [shape = 'u32[144,128]{1,0:T(1,128)}', space=vmem, size = 0x12000, scoped, tag = 'internal scratch']
  %s0 = inlined_call_operand.hbm [shape: f32[8,32], index: 0, kind: input, shape index: {}]
  %s1 = inlined_call_operand.hbm [shape: f32[8,32], index: 1, kind: input, shape index: {}]
  %s2 = inlined_call_operand.hbm [shape: f32[8,32], index: 2, kind: input, shape index: {}]
  %s3 = inlined_call_operand.hbm [shape: f32[1,8], index: 3, kind: output, shape index: {}]
  %s4 = sld [smem:[#allocation0]]
  $region34: #{tpu_custom_call.1} parent=0
    _
  %s6 = ssub.s32 1, %s4
  %s7 = scalar_select 0, %s6, %s4
  $region1: #{tpu_custom_call.1} parent=0
    #allocation2 [shape = 'u8[4096]{0}', space=vmem, size = 0x1000, scoped, tag = 'input window, operand 0, single buffered']
    #allocation3 [shape = 's32[1]{0}', space=sflag, size = 0x4, scoped, tag = 'scoped memory for tpu_custom_call.1']
    #allocation4 [shape = 's32[1]{0}', space=sflag, size = 0x4, scoped, tag = 'scoped memory for tpu_custom_call.1']
    #allocation5 [shape = 'u8[4096]{0}', space=vmem, size = 0x1000, scoped, tag = 'input window, operand 1, single buffered']
    #allocation6 [shape = 's32[1]{0}', space=sflag, size = 0x4, scoped, tag = 'scoped memory for tpu_custom_call.1']
    #allocation7 [shape = 'u8[4096]{0}', space=vmem, size = 0x1000, scoped, tag = 'input window, operand 2, single buffered']
    #allocation8 [shape = 'u8[512]{0}', space=vmem, size = 0x400, scoped, tag = 'output window, operand 0, single buffered']
    %8 = vsyncpa [#allocation3], 0
    %9 = vsyncpa [#allocation6], 0
    %10 = vsyncpa [#allocation4], 0
    // Predicated region
    $region2: #{tpu_custom_call.1} parent=1 // pred_check
      _
    $region3: #{tpu_custom_call.1} parent=1 // pred_check_branch
      %12 = sbr.rel (0) target = $region5
    $region4: #{tpu_custom_call.1} parent=1 // pred_region
      %s14 = ssub.s32 128, 128
      %15 = vsyncadd [#allocation3], %s14
      %s17 = sshll.u32 [#allocation2], 4
      %s18 = int_to_ptr.vmem [resolvable:$true] %s17
      %20 = dma.hbm_to_vmem [thread:$0]  %s0, 128, %s18, [#allocation3]
    $region5: #{tpu_custom_call.1} parent=1 // pred_fallthru
      _
    // Predicated region
    $region6: #{tpu_custom_call.1} parent=1 // pred_check
      _
    $region7: #{tpu_custom_call.1} parent=1 // pred_check_branch
      %22 = sbr.rel (0) target = $region9
    $region8: #{tpu_custom_call.1} parent=1 // pred_region
      %s24 = ssub.s32 128, 128
      %25 = vsyncadd [#allocation6], %s24
      %s27 = sshll.u32 [#allocation5], 4
      %s28 = int_to_ptr.vmem [resolvable:$true] %s27
      %30 = dma.hbm_to_vmem [thread:$0]  %s1, 128, %s28, [#allocation6]
    $region9: #{tpu_custom_call.1} parent=1 // pred_fallthru
      _
    // Predicated region
    $region10: #{tpu_custom_call.1} parent=1 // pred_check
      _
    $region11: #{tpu_custom_call.1} parent=1 // pred_check_branch
      %32 = sbr.rel (0) target = $region13
    $region12: #{tpu_custom_call.1} parent=1 // pred_region
      %s34 = ssub.s32 128, 128
      %35 = vsyncadd [#allocation6], %s34
      %s37 = sshll.u32 [#allocation7], 4
      %s38 = int_to_ptr.vmem [resolvable:$true] %s37
      %40 = dma.hbm_to_vmem [thread:$0]  %s2, 128, %s38, [#allocation6]
    $region13: #{tpu_custom_call.1} parent=1 // pred_fallthru
      _
    // Predicated region
    $region14: #{tpu_custom_call.1} parent=1 // pred_check
      _
    $region15: #{tpu_custom_call.1} parent=1 // pred_check_branch
      %42 = sbr.rel (0) target = $region17
    $region16: #{tpu_custom_call.1} parent=1 // pred_region
      %43 = dma.done [#allocation3], 128
    $region17: #{tpu_custom_call.1} parent=1 // pred_fallthru
      _
    // Predicated region
    $region18: #{tpu_custom_call.1} parent=1 // pred_check
      _
    $region19: #{tpu_custom_call.1} parent=1 // pred_check_branch
      %45 = sbr.rel (0) target = $region21
    $region20: #{tpu_custom_call.1} parent=1 // pred_region
      %46 = dma.done [#allocation6], 128
    $region21: #{tpu_custom_call.1} parent=1 // pred_fallthru
      _
    // Predicated region
    $region22: #{tpu_custom_call.1} parent=1 // pred_check
      _
    $region23: #{tpu_custom_call.1} parent=1 // pred_check_branch
      %48 = sbr.rel (0) target = $region25
    $region24: #{tpu_custom_call.1} parent=1 // pred_region
      %49 = dma.done [#allocation6], 128
    $region25: #{tpu_custom_call.1} parent=1 // pred_fallthru
      _
    %v50 = vld [vmem:[#allocation2] sm:$0xff]
    %v51 = vld [vmem:[#allocation5] sm:$0xff]
    %v52 = vld [vmem:[#allocation7] sm:$0xff]
    %v53 = vmul.f32 %v50, %v50
    %vm54 = vcmask 261120
    %v55 = vsel %vm54, %v53, 0.0
    %56 = vadd.xlane.f32.xlu0 %v55
    %v57 = vpop.xlane.xlu0 %56
    %v58 = vmax.f32 %v57, 1e-24
    %v59 = vrsqrt.pop %v58
    %v60 = vmul.f32 %v50, %v59
    %v61 = vmul.f32 %v51, %v51
    %v62 = vsel %vm54, %v61, 0.0
    %63 = vadd.xlane.f32.xlu0 %v62
    %v64 = vpop.xlane.xlu0 %63
    %v65 = vmax.f32 %v64, 1e-24
    %v66 = vrsqrt.pop %v65
    %v67 = vmul.f32 %v51, %v66
    %v68 = vadd.f32 %v60, %v67
    %v69 = vmul.f32 %v52, %v52
    %v70 = vsel %vm54, %v69, 0.0
    %71 = vadd.xlane.f32.xlu0 %v70
    %v72 = vpop.xlane.xlu0 %71
    %v73 = vmax.f32 %v72, 1e-24
    %v74 = vrsqrt.pop %v73
    %v75 = vmul.f32 %v52, %v74
    %v76 = vsub.f32 %v68, %v75
    %v77 = vand.u32 2147483647, %v76
    %v78 = vsel %vm54, %v77, 0.0
    %79 = vadd.xlane.f32.xlu0 %v78
    %v80 = vpop.xlane.xlu0 %79
    %v82 = vlaneseq
    %v83 = vand.u32 %v82, 127
    %v84 = vlaneseq
    %v85 = vshrl.u32 %v84, 7
    %v86 = vsub.s32 %v83, %v85
    %v87 = vrot.slane %v80, %v86
    %vm89 = vcmask 57344
    %90 = vst.msk [vmem:[#allocation8] sm:$0x1] %vm89, %v87
    // Predicated region
    $region26: #{tpu_custom_call.1} parent=1 // pred_check
      _
    $region27: #{tpu_custom_call.1} parent=1 // pred_check_branch
      %92 = sbr.rel (0) target = $region29
    $region28: #{tpu_custom_call.1} parent=1 // pred_region
      %s94 = ssub.s32 16, 16
      %95 = vsyncadd [#allocation4], %s94
      %s97 = sshll.u32 [#allocation8], 4
      %s98 = int_to_ptr.vmem [resolvable:$true] %s97
      %100 = dma.vmem_to_hbm [thread:$0]  %s98, 16, %s3, [#allocation4]
    $region29: #{tpu_custom_call.1} parent=1 // pred_fallthru
      _
    // Predicated region
    $region30: #{tpu_custom_call.1} parent=1 // pred_check
      _
    $region31: #{tpu_custom_call.1} parent=1 // pred_check_branch
      %102 = sbr.rel (0) target = $region33
    $region32: #{tpu_custom_call.1} parent=1 // pred_region
      %103 = dma.done [#allocation4], 16
    $region33: #{tpu_custom_call.1} parent=1 // pred_fallthru
      _
    %104 = vsyncpa [#allocation3], 1
    %105 = vsyncpa [#allocation6], 1
    %106 = vsyncpa [#allocation4], 1

</llo_original>
